<compile_context>
chip_gen: v5e
topology: v5e:2x2
jax: 0.10.0
libtpu: 0.0.40
codegen_flags: <defaults>
</compile_context>

<pallas_src>
import jax
import jax.numpy as jnp
from jax.experimental import pallas as pl
from jax.experimental.pallas import tpu as pltpu

EPS = 0.0  # GINConv default: init_eps=0, not learned


def _make_gin_kernel(num_classes: int):
    C = num_classes

    def gin_kernel(adj1_ref, dcol_ref, x_ref, params_ref, out_ref):
        # adj1: [N, N] = A + (1+eps)*I  (A[i, j] = 1 iff edge j -> i), shared topology.
        # dcol: [N, 1]  column sums of adj1 (degree + 1 + eps), for fused pooling.
        # x:    [N, B]  node features (F_in = 1), one graph per lane.
        # params (SMEM f32): [w1 (C), b1 (C), w2 row-major (C*C), b2 (C), pad]
        x = x_ref[...]
        N = x.shape[0]

        w1_off = 0
        b1_off = C
        w2_off = 2 * C
        b2_off = 2 * C + C * C

        # ---- conv1: (1+eps)*x + A@x  as a single MXU matmul ------------------
        pre1 = jnp.dot(adj1_ref[...], x, preferred_element_type=jnp.float32)  # [N, B]

        # Degree vector broadcast hoisted out of the per-class loop
        # (broadcast_in_dim is not CSE'd by JAX).
        d_b = jnp.broadcast_to(dcol_ref[...], pre1.shape)                     # [N, B]

        # F_in = 1 -> C Linear1 + relu as VPU broadcast-FMAs, then the fused
        # (conv2 aggregation + SumPooling) degree-weighted sublane reduce.
        pooled = []
        for k in range(C):
            h1k = jnp.maximum(
                pre1 * params_ref[w1_off + k] + params_ref[b1_off + k], 0.0)  # [N, B]
            pooled.append(jnp.sum(d_b * h1k, axis=0, keepdims=True))          # [1, B]

        # ---- Linear2 on the pooled rows (+ N*b2 from pooling the bias) ------
        rows = []
        for c in range(C):
            acc = pooled[0] * params_ref[w2_off + c]                      # w2[0, c]
            for k in range(1, C):
                acc = acc + pooled[k] * params_ref[w2_off + k * C + c]    # w2[k, c]
            rows.append(acc + float(N) * params_ref[b2_off + c])          # [1, B]

        # Single lane-dense [C, B] store (unmasked vst).
        out_ref[...] = jnp.concatenate(rows, axis=0)

    return gin_kernel


def gin_forward(adj, feats, w1, b1, w2, b2):
    """Batched GIN forward.

    adj:   [N, N] shared adjacency (adj[i, j] = 1 iff edge j -> i).
    feats: [N, B] scalar node feature (F_in = 1) of each of B graphs (one per lane).
    w1: [1, C], b1: [1, C], w2: [C, C], b2: [1, C]  (torch Linear weights, transposed).
    returns: [B, C] sum-pooled logits, one row per graph.
    """
    N, B = feats.shape
    f_in, C = w1.shape
    assert f_in == 1, "kernel packs the scalar feature axis into lanes"
    assert w2.shape == (C, C)

    # Graph-structure preprocessing (once per topology, outside the kernel):
    # fold the (1+eps) self term into the adjacency and precompute column sums.
    adj1 = adj.astype(jnp.float32) + (1.0 + EPS) * jnp.eye(N, dtype=jnp.float32)
    dcol = jnp.sum(adj1, axis=0).reshape(N, 1)

    # Pack the 3*C + C*C parameter scalars into one tiny SMEM array (single DMA).
    params = jnp.concatenate(
        [w1.reshape(-1), b1.reshape(-1), w2.reshape(-1), b2.reshape(-1)]
    ).astype(jnp.float32)
    if params.shape[0] < 16:
        params = jnp.pad(params, (0, 16 - params.shape[0]))

    vmem = pl.BlockSpec(memory_space=pltpu.MemorySpace.VMEM)
    smem = pl.BlockSpec(memory_space=pltpu.MemorySpace.SMEM)

    out_cb = pl.pallas_call(
        _make_gin_kernel(C),
        out_shape=jax.ShapeDtypeStruct((C, B), jnp.float32),  # lane-dense [C, B]
        in_specs=[vmem, vmem, vmem, smem],
        out_specs=vmem,
    )(adj1, dcol, feats, params)
    return out_cb.T  # [B, C] — layout plumbing outside the kernel


def gin_reference(adj, feats, w1, b1, w2, b2):
    def one_graph(x_col):                      # x_col: [N]
        x = x_col[:, None]                     # [N, 1]
        h1 = jnp.maximum(((1.0 + EPS) * x + adj @ x) @ w1 + b1, 0.0)
        h2 = ((1.0 + EPS) * h1 + adj @ h1) @ w2 + b2
        return jnp.sum(h2, axis=0)             # [C]
    return jax.vmap(one_graph, in_axes=1, out_axes=0)(feats)   # [B, C]


if __name__ == "__main__":
    N = 16             # nodes per graph
    B = 128            # graphs batched along the 128-lane dimension
    INPUT_SIZE = 1     # module default
    NUM_CLASSES = 2    # module default

    key = jax.random.PRNGKey(0)
    k_feat, k_w1, k_b1, k_w2, k_b2 = jax.random.split(key, 5)

    # Deterministic shared topology: ring with edges both ways (2 in-neighbors
    # per node). adj[i, j] = 1 iff edge j -> i.
    idx = jnp.arange(N)
    adj = (jnp.zeros((N, N), jnp.float32)
           .at[idx, (idx + 1) % N].set(1.0)
           .at[idx, (idx - 1) % N].set(1.0))

    # One scalar feature per node; one graph per column (lane).
    feats = jax.random.normal(k_feat, (N, B), dtype=jnp.float32)

    # torch.nn.Linear-style init: U(-1/sqrt(fan_in), 1/sqrt(fan_in)), stored [F_in, F_out].
    bound1 = 1.0 / (INPUT_SIZE ** 0.5)
    w1 = jax.random.uniform(k_w1, (INPUT_SIZE, NUM_CLASSES), jnp.float32, -bound1, bound1)
    b1 = jax.random.uniform(k_b1, (1, NUM_CLASSES), jnp.float32, -bound1, bound1)
    bound2 = 1.0 / (NUM_CLASSES ** 0.5)
    w2 = jax.random.uniform(k_w2, (NUM_CLASSES, NUM_CLASSES), jnp.float32, -bound2, bound2)
    b2 = jax.random.uniform(k_b2, (1, NUM_CLASSES), jnp.float32, -bound2, bound2)

    out = gin_forward(adj, feats, w1, b1, w2, b2)
    out = jax.block_until_ready(out)

    ref = gin_reference(adj, feats, w1, b1, w2, b2)
    assert out.shape == (B, NUM_CLASSES)
    assert jnp.allclose(out, ref, atol=1e-4, rtol=1e-4), (out, ref)

    print("KERNEL_OK")
</pallas_src>

<mosaic_0001>
module attributes {stable_mosaic.version = 11 : i64} {
  func.func @gin_kernel(%arg0: memref<16x16xf32, #tpu.memory_space<vmem>>, %arg1: memref<16x1xf32, #tpu.memory_space<vmem>>, %arg2: memref<16x128xf32, #tpu.memory_space<vmem>>, %arg3: memref<16xf32, #tpu.memory_space<smem>>, %arg4: memref<2x128xf32, #tpu.memory_space<vmem>>) attributes {dimension_semantics = [], scalar_prefetch = 0 : i64, scratch_operands = 0 : i64, tpu.core_type = #tpu.core_type<tc>} {
    %c0 = arith.constant 0 : index
    %c0_0 = arith.constant 0 : index
    %0 = vector.load %arg2[%c0, %c0_0] : memref<16x128xf32, #tpu.memory_space<vmem>>, vector<16x128xf32>
    %c0_1 = arith.constant 0 : index
    %c0_2 = arith.constant 0 : index
    %1 = vector.load %arg0[%c0_1, %c0_2] : memref<16x16xf32, #tpu.memory_space<vmem>>, vector<16x16xf32>
    %cst = arith.constant dense<0.000000e+00> : vector<16x128xf32>
    %2 = tpu.matmul %1, %0, %cst {dimension_numbers = #tpu.dot_dimension_numbers<[1], [0], [0], [1], [0, 0, 1, 1], [], []>} : vector<16x16xf32>, vector<16x128xf32>, vector<16x128xf32> -> vector<16x128xf32>
    %c0_3 = arith.constant 0 : index
    %c0_4 = arith.constant 0 : index
    %3 = vector.load %arg1[%c0_3, %c0_4] : memref<16x1xf32, #tpu.memory_space<vmem>>, vector<16x1xf32>
    %4 = vector.shape_cast %3 : vector<16x1xf32> to vector<16x1xf32>
    %5 = vector.broadcast %4 : vector<16x1xf32> to vector<16x128xf32>
    %c0_5 = arith.constant 0 : index
    %6 = memref.load %arg3[%c0_5] : memref<16xf32, #tpu.memory_space<smem>>
    %7 = vector.broadcast %6 : f32 to vector<16x128xf32>
    %8 = arith.mulf %2, %7 : vector<16x128xf32>
    %c2 = arith.constant 2 : index
    %9 = memref.load %arg3[%c2] : memref<16xf32, #tpu.memory_space<smem>>
    %10 = vector.broadcast %9 : f32 to vector<16x128xf32>
    %11 = arith.addf %8, %10 : vector<16x128xf32>
    %cst_6 = arith.constant 0.000000e+00 : f32
    %12 = vector.broadcast %cst_6 : f32 to vector<16x128xf32>
    %13 = arith.maximumf %11, %12 : vector<16x128xf32>
    %14 = arith.mulf %5, %13 : vector<16x128xf32>
    %cst_7 = arith.constant dense<0.000000e+00> : vector<128xf32>
    %15 = vector.multi_reduction <add>, %14, %cst_7 [0] : vector<16x128xf32> to vector<128xf32>
    %16 = vector.shape_cast %15 : vector<128xf32> to vector<1x128xf32>
    %c1 = arith.constant 1 : index
    %17 = memref.load %arg3[%c1] : memref<16xf32, #tpu.memory_space<smem>>
    %18 = vector.broadcast %17 : f32 to vector<16x128xf32>
    %19 = arith.mulf %2, %18 : vector<16x128xf32>
    %c3 = arith.constant 3 : index
    %20 = memref.load %arg3[%c3] : memref<16xf32, #tpu.memory_space<smem>>
    %21 = vector.broadcast %20 : f32 to vector<16x128xf32>
    %22 = arith.addf %19, %21 : vector<16x128xf32>
    %cst_8 = arith.constant 0.000000e+00 : f32
    %23 = vector.broadcast %cst_8 : f32 to vector<16x128xf32>
    %24 = arith.maximumf %22, %23 : vector<16x128xf32>
    %25 = arith.mulf %5, %24 : vector<16x128xf32>
    %cst_9 = arith.constant dense<0.000000e+00> : vector<128xf32>
    %26 = vector.multi_reduction <add>, %25, %cst_9 [0] : vector<16x128xf32> to vector<128xf32>
    %27 = vector.shape_cast %26 : vector<128xf32> to vector<1x128xf32>
    %c4 = arith.constant 4 : index
    %28 = memref.load %arg3[%c4] : memref<16xf32, #tpu.memory_space<smem>>
    %29 = vector.broadcast %28 : f32 to vector<1x128xf32>
    %30 = arith.mulf %16, %29 : vector<1x128xf32>
    %c6 = arith.constant 6 : index
    %31 = memref.load %arg3[%c6] : memref<16xf32, #tpu.memory_space<smem>>
    %32 = vector.broadcast %31 : f32 to vector<1x128xf32>
    %33 = arith.mulf %27, %32 : vector<1x128xf32>
    %34 = arith.addf %30, %33 : vector<1x128xf32>
    %c8 = arith.constant 8 : index
    %35 = memref.load %arg3[%c8] : memref<16xf32, #tpu.memory_space<smem>>
    %cst_10 = arith.constant 1.600000e+01 : f32
    %36 = arith.mulf %cst_10, %35 : f32
    %37 = vector.broadcast %36 : f32 to vector<1x128xf32>
    %38 = arith.addf %34, %37 : vector<1x128xf32>
    %c5 = arith.constant 5 : index
    %39 = memref.load %arg3[%c5] : memref<16xf32, #tpu.memory_space<smem>>
    %40 = vector.broadcast %39 : f32 to vector<1x128xf32>
    %41 = arith.mulf %16, %40 : vector<1x128xf32>
    %c7 = arith.constant 7 : index
    %42 = memref.load %arg3[%c7] : memref<16xf32, #tpu.memory_space<smem>>
    %43 = vector.broadcast %42 : f32 to vector<1x128xf32>
    %44 = arith.mulf %27, %43 : vector<1x128xf32>
    %45 = arith.addf %41, %44 : vector<1x128xf32>
    %c9 = arith.constant 9 : index
    %46 = memref.load %arg3[%c9] : memref<16xf32, #tpu.memory_space<smem>>
    %cst_11 = arith.constant 1.600000e+01 : f32
    %47 = arith.mulf %cst_11, %46 : f32
    %48 = vector.broadcast %47 : f32 to vector<1x128xf32>
    %49 = arith.addf %45, %48 : vector<1x128xf32>
    %50 = tpu.concatenate %38, %49 in 0 : vector<1x128xf32>, vector<1x128xf32> -> vector<2x128xf32>
    %c0_12 = arith.constant 0 : index
    %c0_13 = arith.constant 0 : index
    %51 = vector.load %arg4[%c0_12, %c0_13] : memref<2x128xf32, #tpu.memory_space<vmem>>, vector<2x128xf32>
    tpu.vector_store %arg4[%c0_12, %c0_13], %50 {strides = array<i32>} : memref<2x128xf32, #tpu.memory_space<vmem>>, vector<2x128xf32>,
    return
  }
}

</mosaic_0001>

<llo_original>
// kernel: tpu_custom_call.1
$region0: #{tpu_custom_call.1}
  #allocation0 [shape = 'u32[]', space=smem, size = 0x4, offset = 0x4, fixed_abs, tag = 'smem constant byte address 0x4 - core index']
  #allocation1 [shape = 'u32[72,128]{1,0:T(1,128)}', space=vmem, size = 0x9000, scoped, tag = 'internal scratch']
  %s0 = inlined_call_operand.vmem [shape: f32[16,16], index: 0, kind: input, shape index: {}]
  %s1 = inlined_call_operand.vmem [shape: f32[16,1], index: 1, kind: input, shape index: {}]
  %s2 = inlined_call_operand.hbm [shape: f32[16,128], index: 2, kind: input, shape index: {}]
  %s3 = inlined_call_operand.vmem [shape: f32[16], index: 3, kind: input, shape index: {}]
  %s4 = inlined_call_operand.hbm [shape: f32[2,128], index: 4, kind: output, shape index: {}]
  %s5 = sld [smem:[#allocation0]]
  $region34: #{tpu_custom_call.1} parent=0
    _
  %s7 = ssub.s32 1, %s5
  %s8 = scalar_select 0, %s7, %s5
  $region1: #{tpu_custom_call.1} parent=0
    #allocation2 [shape = 'u8[8192]{0}', space=vmem, size = 0x2000, scoped, tag = 'input window, operand 2, single buffered']
    #allocation3 [shape = 's32[1]{0}', space=sflag, size = 0x4, scoped, tag = 'scoped memory for tpu_custom_call.1']
    #allocation4 [shape = 's32[1]{0}', space=sflag, size = 0x4, scoped, tag = 'scoped memory for tpu_custom_call.1']
    #allocation5 [shape = 's32[1]{0}', space=sflag, size = 0x4, scoped, tag = 'scoped memory for tpu_custom_call.1']
    #allocation6 [shape = 'u8[512]{0}', space=smem, size = 0x200, scoped, tag = 'input window, operand 3, single buffered']
    #allocation7 [shape = 'u8[1024]{0}', space=vmem, size = 0x400, scoped, tag = 'output window, operand 0, single buffered']
    %9 = vsyncpa [#allocation3], 0
    %10 = vsyncpa [#allocation5], 0
    %11 = vsyncpa [#allocation4], 0
    // Predicated region
    $region2: #{tpu_custom_call.1} parent=1 // pred_check
      _
    $region3: #{tpu_custom_call.1} parent=1 // pred_check_branch
      %13 = sbr.rel (0) target = $region5
    $region4: #{tpu_custom_call.1} parent=1 // pred_region
      _
    $region5: #{tpu_custom_call.1} parent=1 // pred_fallthru
      _
    // Predicated region
    $region6: #{tpu_custom_call.1} parent=1 // pred_check
      _
    $region7: #{tpu_custom_call.1} parent=1 // pred_check_branch
      %15 = sbr.rel (0) target = $region9
    $region8: #{tpu_custom_call.1} parent=1 // pred_region
      _
    $region9: #{tpu_custom_call.1} parent=1 // pred_fallthru
      _
    // Predicated region
    $region10: #{tpu_custom_call.1} parent=1 // pred_check
      _
    $region11: #{tpu_custom_call.1} parent=1 // pred_check_branch
      %17 = sbr.rel (0) target = $region13
    $region12: #{tpu_custom_call.1} parent=1 // pred_region
      %19 = vsyncadd [#allocation3], 0
      %s20 = sshll.u32 %s2, 4
      %s21 = int_to_ptr.hbm [resolvable:$true] %s20
      %s22 = sshll.u32 [#allocation2], 4
      %s23 = int_to_ptr.vmem [resolvable:$true] %s22
      %28 = dma.hbm_to_vmem [thread:$0]  %s21, 256, %s23, [#allocation3], 128, 128, 8
    $region13: #{tpu_custom_call.1} parent=1 // pred_fallthru
      _
    // Predicated region
    $region14: #{tpu_custom_call.1} parent=1 // pred_check
      _
    $region15: #{tpu_custom_call.1} parent=1 // pred_check_branch
      %30 = sbr.rel (0) target = $region17
    $region16: #{tpu_custom_call.1} parent=1 // pred_region
      %32 = vsyncadd [#allocation5], 0
      %s34 = sshll.u32 %s3, 4
      %s35 = int_to_ptr.vmem [resolvable:$true] %s34
      %37 = dma.vmem_to_smem %s35, 16, [#allocation6], [#allocation5]
    $region17: #{tpu_custom_call.1} parent=1 // pred_fallthru
      _
    // Predicated region
    $region18: #{tpu_custom_call.1} parent=1 // pred_check
      _
    $region19: #{tpu_custom_call.1} parent=1 // pred_check_branch
      %39 = sbr.rel (0) target = $region21
    $region20: #{tpu_custom_call.1} parent=1 // pred_region
      %41 = dma.done [#allocation3], 256
    $region21: #{tpu_custom_call.1} parent=1 // pred_fallthru
      _
    // Predicated region
    $region22: #{tpu_custom_call.1} parent=1 // pred_check
      _
    $region23: #{tpu_custom_call.1} parent=1 // pred_check_branch
      %43 = sbr.rel (0) target = $region25
    $region24: #{tpu_custom_call.1} parent=1 // pred_region
      %45 = dma.done [#allocation5], 16
    $region25: #{tpu_custom_call.1} parent=1 // pred_fallthru
      _
    %46 = sfence
    %v47 = vld [vmem:[#allocation2] sm:$0xff]
    %v48 = vld [vmem:[#allocation2 + $0x8] sm:$0xff]
    %v49 = vld [vmem:[%s0] sm:$0xff]
    %v50 = vld [vmem:[%s0 + $0x8] sm:$0xff]
    %vm51 = vcmask 130048
    %v53 = vsel %vm51, %v49, 0
    %v56 = vsel %vm51, %v50, 0
    %58 = vmatpush.msra.mxu0 0.0
    %59 = vmatpush.msra.mxu0 0.0
    %60 = vmatpush.msra.mxu0 0.0
    %61 = vmatpush.msra.mxu0 0.0
    %62 = vmatpush.msra.mxu0 0.0
    %63 = vmatpush.msra.mxu0 0.0
    %64 = vmatpush.msra.mxu0 0.0
    %65 = vmatpush.msra.mxu0 0.0
    %66 = vmatpush.msra.mxu0 0.0
    %67 = vmatpush.msra.mxu0 0.0
    %68 = vmatpush.msra.mxu0 0.0
    %69 = vmatpush.msra.mxu0 0.0
    %70 = vmatpush.msra.mxu0 0.0
    %71 = vmatpush.msra.mxu0 0.0
    %72 = vmatpush.msra.mxu0 %v48
    %73 = vmatpush.msra.mxu0 %v47
    %74 = vmatmul.f32.gmra.mxu0 %v53
    %v75 = vpop.f32.mrf.mxu0
    %v76 = vadd.f32 0.0, %v75
    %77 = vmatmul.f32.gmra.mxu0 %v56
    %v78 = vpop.f32.mrf.mxu0
    %v79 = vadd.f32 0.0, %v78
    %80 = vdwg.mxu0
    %v81 = vld [vmem:[%s1] sm:$0xff]
    %v82 = vld [vmem:[%s1 + $0x8] sm:$0xff]
    %84 = vset.pattern.permute.xlu0 0
    %85 = vperm.xlu0 %84, %v81
    %v86 = vpop.permute.xlu0 %85
    %89 = vset.pattern.permute.xlu0 0
    %90 = vperm.xlu0 %89, %v82
    %v91 = vpop.permute.xlu0 %90
    %s93 = sld [smem:[#allocation6]]
    %v94 = vstv %s93
    %v95 = vmul.f32 %v76, %v94
    %v96 = vmul.f32 %v79, %v94
    %s97 = sld [smem:[#allocation6 + $0x2]]
    %v98 = vstv %s97
    %v99 = vadd.f32 %v95, %v98
    %v100 = vadd.f32 %v96, %v98
    %v101 = vmax.f32 %v99, 0.0
    %v102 = vmax.f32 %v100, 0.0
    %v103 = vmul.f32 %v86, %v101
    %v104 = vmul.f32 %v91, %v102
    %v105 = vadd.f32 %v103, %v104
    %v106 = vrot.slane %v105, 4
    %v107 = vadd.f32 %v105, %v106
    %v108 = vrot.slane %v107, 2
    %v109 = vadd.f32 %v107, %v108
    %v110 = vrot.slane %v109, 1
    %v111 = vadd.f32 %v109, %v110
    %s112 = sld [smem:[#allocation6 + $0x1]]
    %v113 = vstv %s112
    %v114 = vmul.f32 %v76, %v113
    %v115 = vmul.f32 %v79, %v113
    %s116 = sld [smem:[#allocation6 + $0x3]]
    %v117 = vstv %s116
    %v118 = vadd.f32 %v114, %v117
    %v119 = vadd.f32 %v115, %v117
    %v120 = vmax.f32 %v118, 0.0
    %v121 = vmax.f32 %v119, 0.0
    %v122 = vmul.f32 %v86, %v120
    %v123 = vmul.f32 %v91, %v121
    %v124 = vadd.f32 %v122, %v123
    %v125 = vrot.slane %v124, 4
    %v126 = vadd.f32 %v124, %v125
    %v127 = vrot.slane %v126, 2
    %v128 = vadd.f32 %v126, %v127
    %v129 = vrot.slane %v128, 1
    %v130 = vadd.f32 %v128, %v129
    %s131 = sld [smem:[#allocation6 + $0x4]]
    %v132 = vstv %s131
    %v133 = vmul.f32 %v111, %v132
    %s134 = sld [smem:[#allocation6 + $0x6]]
    %v135 = vstv %s134
    %v136 = vmul.f32 %v130, %v135
    %v137 = vadd.f32 %v133, %v136
    %s138 = sld [smem:[#allocation6 + $0x8]]
    %s139 = smul.f32 %s138, 16.0
    %v140 = vstv %s139
    %v141 = vadd.f32 %v137, %v140
    %s142 = sld [smem:[#allocation6 + $0x5]]
    %v143 = vstv %s142
    %v144 = vmul.f32 %v111, %v143
    %s145 = sld [smem:[#allocation6 + $0x7]]
    %v146 = vstv %s145
    %v147 = vmul.f32 %v130, %v146
    %v148 = vadd.f32 %v144, %v147
    %s149 = sld [smem:[#allocation6 + $0x9]]
    %s150 = smul.f32 %s149, 16.0
    %v151 = vstv %s150
    %v152 = vadd.f32 %v148, %v151
    %vm153 = vcmask 1040384
    %v154 = vsel %vm153, %v141, %v152
    %155 = vst [vmem:[#allocation7] sm:$0x3] %v154
    // Predicated region
    $region26: #{tpu_custom_call.1} parent=1 // pred_check
      _
    $region27: #{tpu_custom_call.1} parent=1 // pred_check_branch
      %157 = sbr.rel (0) target = $region29
    $region28: #{tpu_custom_call.1} parent=1 // pred_region
      %159 = vsyncadd [#allocation4], 0
      %s161 = sshll.u32 [#allocation7], 4
      %s162 = int_to_ptr.vmem [resolvable:$true] %s161
      %s163 = sshll.u32 %s4, 4
      %s164 = int_to_ptr.hbm [resolvable:$true] %s163
      %166 = dma.vmem_to_hbm [thread:$0]  %s162, 32, %s164, [#allocation4]
    $region29: #{tpu_custom_call.1} parent=1 // pred_fallthru
      _
    // Predicated region
    $region30: #{tpu_custom_call.1} parent=1 // pred_check
      _
    $region31: #{tpu_custom_call.1} parent=1 // pred_check_branch
      %168 = sbr.rel (0) target = $region33
    $region32: #{tpu_custom_call.1} parent=1 // pred_region
      %170 = dma.done [#allocation4], 32
    $region33: #{tpu_custom_call.1} parent=1 // pred_fallthru
      _
    %171 = vsyncpa [#allocation3], 1
    %172 = vsyncpa [#allocation4], 1
    %173 = vsyncpa [#allocation5], 1

</llo_original>
